<compile_context>
chip_gen: v6e
topology: v6e:2x2x1
jax: 0.10.0
libtpu: 0.0.40
codegen_flags: <defaults>
</compile_context>

<pallas_src>
import jax
import jax.numpy as jnp
from jax.experimental import pallas as pl
from jax.experimental.pallas import tpu as pltpu


def _round_up(x, m):
    return ((x + m - 1) // m) * m


def _transe_kernel(row_ref, col_ref, typ_ref, ht_ref, gt_ref, out_ref):
    # row/col/typ: (1, 1, TE) int32 blocks (one tile of edge indices, VMEM)
    # ht_ref: (D, N) f32 resident VMEM (transposed node table)
    # gt_ref: (D, R) f32 resident VMEM (transposed relation table)
    # out_ref: (1, 1, TE) f32 lane-dense output block
    row = row_ref[0]                       # (1, TE) int32
    col = col_ref[0]                       # (1, TE) int32
    typ = typ_ref[0]                       # (1, TE) int32

    _, n = ht_ref.shape
    r = gt_ref.shape[1]
    te = row.shape[-1]

    # Signed one-hot "gather" selectors, built on the VPU.
    node_ids = jax.lax.broadcasted_iota(jnp.int32, (n, te), 0)            # (N, TE)
    sel_h = ((node_ids == row).astype(jnp.float32)
             - (node_ids == col).astype(jnp.float32))                     # (N, TE)
    rel_ids = jax.lax.broadcasted_iota(jnp.int32, (r, te), 0)             # (R, TE)
    sel_g = (rel_ids == typ).astype(jnp.float32)                          # (R, TE)

    # Fused gather + translation on the (otherwise idle) MXU:
    #   diff[:, e] = h[:, row_e] - h[:, col_e] + g[:, typ_e]
    diff = (jnp.dot(ht_ref[...], sel_h, preferred_element_type=jnp.float32)
            + jnp.dot(gt_ref[...], sel_g, preferred_element_type=jnp.float32))  # (D, TE)

    # L1 reduction over the embedding dim (sublanes) -> lane-dense (1, TE) row.
    dist = jnp.sum(jnp.abs(diff), axis=0, keepdims=True)                  # (1, TE)
    out_ref[...] = dist.reshape(1, 1, te)


def transe_forward(h, g, edge_idx, edge_type, *, te=128):
    """Pallas TransE forward: returns (E,) float32 L1 dissimilarities."""
    assert te % 128 == 0, "edge tile must be lane-dense (multiple of 128); sweep 128-512"
    h = jnp.asarray(h, jnp.float32)
    g = jnp.asarray(g, jnp.float32)
    n, d = h.shape
    r = g.shape[0]
    e = int(edge_type.shape[0])

    # Pad the edge list to a multiple of the tile; padded edges gather row 0 /
    # relation 0 and produce garbage distances that are sliced away below.
    e_pad = _round_up(max(e, 1), te)
    num_tiles = e_pad // te

    def _pad(x):
        x = jnp.asarray(x, jnp.int32)
        return jnp.zeros((e_pad,), jnp.int32).at[:e].set(x).reshape(num_tiles, 1, te)

    row = _pad(edge_idx[0])
    col = _pad(edge_idx[1])
    typ = _pad(edge_type)

    # Transposed tables: embedding dim on sublanes, node/relation id on lanes,
    # so each tile's result is naturally a lane-dense (1, TE) row.
    h_t = h.T          # (D, N)
    g_t = g.T          # (D, R)

    # Explicit VMEM budget: resident (padded) tables + double-buffered blocks.
    f32 = 4
    ht_bytes = _round_up(d, 8) * _round_up(n, 128) * f32
    gt_bytes = _round_up(d, 8) * _round_up(r, 128) * f32
    blk_bytes = 8 * _round_up(te, 128) * f32          # one (1,1,TE) block, padded
    est = 2 * (ht_bytes + gt_bytes) + 2 * 4 * blk_bytes + (4 << 20)
    vmem_limit = int(min(max(est, 16 << 20), 56 << 20))

    out = pl.pallas_call(
        _transe_kernel,
        out_shape=jax.ShapeDtypeStruct((num_tiles, 1, te), jnp.float32),
        grid_spec=pltpu.PrefetchScalarGridSpec(
            num_scalar_prefetch=0,
            grid=(num_tiles,),
            in_specs=[
                pl.BlockSpec((1, 1, te), lambda i: (i, 0, 0)),   # row indices tile
                pl.BlockSpec((1, 1, te), lambda i: (i, 0, 0)),   # col indices tile
                pl.BlockSpec((1, 1, te), lambda i: (i, 0, 0)),   # edge_type tile
                # TODO(synk): for node tables too large for VMEM (notably v7x's
                # 64 MiB), switch h_t to memory_space=pl.ANY and do manual
                # double-buffered DMA row gathers driven by SMEM indices.
                pl.BlockSpec((d, n), lambda i: (0, 0)),          # h^T resident in VMEM
                pl.BlockSpec((d, r), lambda i: (0, 0)),          # g^T resident in VMEM
            ],
            out_specs=pl.BlockSpec((1, 1, te), lambda i: (i, 0, 0)),
        ),
        compiler_params=pltpu.CompilerParams(
            dimension_semantics=("parallel",),   # edges independent; shards across TCs on v7x
            vmem_limit_bytes=vmem_limit,
        ),
    )(row, col, typ, h_t, g_t)

    return out.reshape(e_pad)[:e]


if __name__ == "__main__":
    key = jax.random.PRNGKey(0)
    k_h, k_g, k_row, k_col, k_typ = jax.random.split(key, 5)

    num_nodes, num_rel, dim, num_edges = 16, 4, 32, 16

    # Embeddings are rounded to bf16-representable f32 values so the MXU
    # one-hot gather (whose f32 matmul passes go through bf16 at default
    # precision) is bit-exact, allowing a tight tolerance against the
    # pure-JAX reference.
    h = jax.random.normal(k_h, (num_nodes, dim), jnp.float32)
    h = h.astype(jnp.bfloat16).astype(jnp.float32)
    g = jax.random.normal(k_g, (num_rel, dim), jnp.float32)
    g = g.astype(jnp.bfloat16).astype(jnp.float32)

    row = jax.random.randint(k_row, (num_edges,), 0, num_nodes, dtype=jnp.int32)
    col = jax.random.randint(k_col, (num_edges,), 0, num_nodes, dtype=jnp.int32)
    edge_idx = jnp.stack([row, col], axis=0)                     # (2, E)
    edge_type = jax.random.randint(k_typ, (num_edges,), 0, num_rel, dtype=jnp.int32)

    d_kernel = jax.block_until_ready(transe_forward(h, g, edge_idx, edge_type, te=128))

    # Pure-JAX reference.
    d_ref = jnp.sum(jnp.abs(h[edge_idx[0]] + g[edge_type] - h[edge_idx[1]]), axis=1)
    assert d_kernel.shape == (num_edges,)
    assert jnp.allclose(d_kernel, d_ref, rtol=1e-4, atol=1e-4), (d_kernel, d_ref)

    print("KERNEL_OK")
</pallas_src>

<mosaic_0001>
module attributes {stable_mosaic.version = 11 : i64} {
  func.func @_transe_kernel(%arg0: i32, %arg1: memref<1x1x128xi32, #tpu.memory_space<vmem>>, %arg2: memref<1x1x128xi32, #tpu.memory_space<vmem>>, %arg3: memref<1x1x128xi32, #tpu.memory_space<vmem>>, %arg4: memref<32x16xf32, #tpu.memory_space<vmem>>, %arg5: memref<32x4xf32, #tpu.memory_space<vmem>>, %arg6: memref<1x1x128xf32, #tpu.memory_space<vmem>>) attributes {dimension_semantics = [#tpu.dimension_semantics<parallel>], iteration_bounds = array<i64: 1>, scalar_prefetch = 0 : i64, scratch_operands = 0 : i64, tpu.core_type = #tpu.core_type<tc>, window_params = [{transform_indices = @transform_0, window_bounds = array<i64: 1, 1, 128>}, {transform_indices = @transform_1, window_bounds = array<i64: 1, 1, 128>}, {transform_indices = @transform_2, window_bounds = array<i64: 1, 1, 128>}, {pipeline_mode = #tpu.pipeline_mode<synchronous>, transform_indices = @transform_3, window_bounds = array<i64: 32, 16>}, {pipeline_mode = #tpu.pipeline_mode<synchronous>, transform_indices = @transform_4, window_bounds = array<i64: 32, 4>}, {transform_indices = @transform_5, window_bounds = array<i64: 1, 1, 128>}]} {
    %c0 = arith.constant 0 : index
    %c0_0 = arith.constant 0 : index
    %c0_1 = arith.constant 0 : index
    %0 = vector.load %arg1[%c0, %c0_0, %c0_1] : memref<1x1x128xi32, #tpu.memory_space<vmem>>, vector<1x1x128xi32>
    %1 = vector.shape_cast %0 : vector<1x1x128xi32> to vector<1x128xi32>
    %c0_2 = arith.constant 0 : index
    %c0_3 = arith.constant 0 : index
    %c0_4 = arith.constant 0 : index
    %2 = vector.load %arg2[%c0_2, %c0_3, %c0_4] : memref<1x1x128xi32, #tpu.memory_space<vmem>>, vector<1x1x128xi32>
    %3 = vector.shape_cast %2 : vector<1x1x128xi32> to vector<1x128xi32>
    %c0_5 = arith.constant 0 : index
    %c0_6 = arith.constant 0 : index
    %c0_7 = arith.constant 0 : index
    %4 = vector.load %arg3[%c0_5, %c0_6, %c0_7] : memref<1x1x128xi32, #tpu.memory_space<vmem>>, vector<1x1x128xi32>
    %5 = vector.shape_cast %4 : vector<1x1x128xi32> to vector<1x128xi32>
    %6 = tpu.iota {dimensions = array<i32: 0>} : vector<16x128xi32>
    %7 = vector.broadcast %1 : vector<1x128xi32> to vector<16x128xi32>
    %8 = arith.cmpi eq, %6, %7 : vector<16x128xi32>
    %9 = arith.extui %8 : vector<16x128xi1> to vector<16x128xi32>
    %10 = arith.sitofp %9 : vector<16x128xi32> to vector<16x128xf32>
    %11 = vector.broadcast %3 : vector<1x128xi32> to vector<16x128xi32>
    %12 = arith.cmpi eq, %6, %11 : vector<16x128xi32>
    %13 = arith.extui %12 : vector<16x128xi1> to vector<16x128xi32>
    %14 = arith.sitofp %13 : vector<16x128xi32> to vector<16x128xf32>
    %15 = arith.subf %10, %14 : vector<16x128xf32>
    %16 = tpu.iota {dimensions = array<i32: 0>} : vector<4x128xi32>
    %17 = vector.broadcast %5 : vector<1x128xi32> to vector<4x128xi32>
    %18 = arith.cmpi eq, %16, %17 : vector<4x128xi32>
    %19 = arith.extui %18 : vector<4x128xi1> to vector<4x128xi32>
    %20 = arith.sitofp %19 : vector<4x128xi32> to vector<4x128xf32>
    %c0_8 = arith.constant 0 : index
    %c0_9 = arith.constant 0 : index
    %21 = vector.load %arg4[%c0_8, %c0_9] : memref<32x16xf32, #tpu.memory_space<vmem>>, vector<32x16xf32>
    %cst = arith.constant dense<0.000000e+00> : vector<32x128xf32>
    %22 = tpu.matmul %21, %15, %cst {dimension_numbers = #tpu.dot_dimension_numbers<[1], [0], [0], [1], [0, 0, 1, 1], [], []>} : vector<32x16xf32>, vector<16x128xf32>, vector<32x128xf32> -> vector<32x128xf32>
    %c0_10 = arith.constant 0 : index
    %c0_11 = arith.constant 0 : index
    %23 = vector.load %arg5[%c0_10, %c0_11] : memref<32x4xf32, #tpu.memory_space<vmem>>, vector<32x4xf32>
    %cst_12 = arith.constant dense<0.000000e+00> : vector<32x128xf32>
    %24 = tpu.matmul %23, %20, %cst_12 {dimension_numbers = #tpu.dot_dimension_numbers<[1], [0], [0], [1], [0, 0, 1, 1], [], []>} : vector<32x4xf32>, vector<4x128xf32>, vector<32x128xf32> -> vector<32x128xf32>
    %25 = arith.addf %22, %24 : vector<32x128xf32>
    %26 = math.absf %25 : vector<32x128xf32>
    %cst_13 = arith.constant dense<0.000000e+00> : vector<128xf32>
    %27 = vector.multi_reduction <add>, %26, %cst_13 [0] : vector<32x128xf32> to vector<128xf32>
    %28 = vector.shape_cast %27 : vector<128xf32> to vector<1x128xf32>
    %29 = vector.shape_cast %28 : vector<1x128xf32> to vector<1x1x128xf32>
    %c0_14 = arith.constant 0 : index
    %c0_15 = arith.constant 0 : index
    %c0_16 = arith.constant 0 : index
    %30 = vector.load %arg6[%c0_14, %c0_15, %c0_16] : memref<1x1x128xf32, #tpu.memory_space<vmem>>, vector<1x1x128xf32>
    tpu.vector_store %arg6[%c0_14, %c0_15, %c0_16], %29 {strides = array<i32>} : memref<1x1x128xf32, #tpu.memory_space<vmem>>, vector<1x1x128xf32>,
    return
  }
  func.func @transform_0(%arg0: i32) -> (i32, i32, i32) {
    %c0_i32 = arith.constant 0 : i32
    %c0_i32_0 = arith.constant 0 : i32
    %c0_i32_1 = arith.constant 0 : i32
    return %arg0, %c0_i32, %c0_i32_0 : i32, i32, i32
  }
  func.func @transform_1(%arg0: i32) -> (i32, i32, i32) {
    %c0_i32 = arith.constant 0 : i32
    %c0_i32_0 = arith.constant 0 : i32
    %c0_i32_1 = arith.constant 0 : i32
    return %arg0, %c0_i32, %c0_i32_0 : i32, i32, i32
  }
  func.func @transform_2(%arg0: i32) -> (i32, i32, i32) {
    %c0_i32 = arith.constant 0 : i32
    %c0_i32_0 = arith.constant 0 : i32
    %c0_i32_1 = arith.constant 0 : i32
    return %arg0, %c0_i32, %c0_i32_0 : i32, i32, i32
  }
  func.func @transform_3(%arg0: i32) -> (i32, i32) {
    %c0_i32 = arith.constant 0 : i32
    %c0_i32_0 = arith.constant 0 : i32
    %c0_i32_1 = arith.constant 0 : i32
    return %c0_i32, %c0_i32_0 : i32, i32
  }
  func.func @transform_4(%arg0: i32) -> (i32, i32) {
    %c0_i32 = arith.constant 0 : i32
    %c0_i32_0 = arith.constant 0 : i32
    %c0_i32_1 = arith.constant 0 : i32
    return %c0_i32, %c0_i32_0 : i32, i32
  }
  func.func @transform_5(%arg0: i32) -> (i32, i32, i32) {
    %c0_i32 = arith.constant 0 : i32
    %c0_i32_0 = arith.constant 0 : i32
    %c0_i32_1 = arith.constant 0 : i32
    return %arg0, %c0_i32, %c0_i32_0 : i32, i32, i32
  }
}

</mosaic_0001>

<llo_original>
// kernel: tpu_custom_call.1
$region0: #{tpu_custom_call.1}
  #allocation0 [shape = 'u32[]', space=smem, size = 0x4, offset = 0x4, fixed_abs, tag = 'smem constant byte address 0x4 - core index']
  #allocation1 [shape = 'u32[144,128]{1,0:T(1,128)}', space=vmem, size = 0x12000, scoped, tag = 'internal scratch']
  %s0 = inlined_call_operand.vmem [shape: s32[1,1,128], index: 0, kind: input, shape index: {}]
  %s1 = inlined_call_operand.vmem [shape: s32[1,1,128], index: 1, kind: input, shape index: {}]
  %s2 = inlined_call_operand.vmem [shape: s32[1,1,128], index: 2, kind: input, shape index: {}]
  %s3 = inlined_call_operand.vmem [shape: f32[32,16], index: 3, kind: input, shape index: {}]
  %s4 = inlined_call_operand.vmem [shape: f32[32,4], index: 4, kind: input, shape index: {}]
  %s5 = inlined_call_operand.hbm [shape: f32[1,1,128], index: 5, kind: output, shape index: {}]
  %s6 = sld [smem:[#allocation0]]
  $region30: #{tpu_custom_call.1} parent=0
    _
  %s8 = ssub.s32 1, %s6
  %s9 = scalar_select 0, %s8, %s6
  $region1: #{tpu_custom_call.1} parent=0
    #allocation2 [shape = 'u8[512]{0}', space=vmem, size = 0x400, scoped, tag = 'output window, operand 0, single buffered']
    #allocation3 [shape = 's32[1]{0}', space=sflag, size = 0x4, scoped, tag = 'scoped memory for tpu_custom_call.1']
    %10 = vsyncpa [#allocation3], 0
    // Predicated region
    $region2: #{tpu_custom_call.1} parent=1 // pred_check
      _
    $region3: #{tpu_custom_call.1} parent=1 // pred_check_branch
      %12 = sbr.rel (0) target = $region5
    $region4: #{tpu_custom_call.1} parent=1 // pred_region
      _
    $region5: #{tpu_custom_call.1} parent=1 // pred_fallthru
      _
    // Predicated region
    $region6: #{tpu_custom_call.1} parent=1 // pred_check
      _
    $region7: #{tpu_custom_call.1} parent=1 // pred_check_branch
      %14 = sbr.rel (0) target = $region9
    $region8: #{tpu_custom_call.1} parent=1 // pred_region
      _
    $region9: #{tpu_custom_call.1} parent=1 // pred_fallthru
      _
    // Predicated region
    $region10: #{tpu_custom_call.1} parent=1 // pred_check
      _
    $region11: #{tpu_custom_call.1} parent=1 // pred_check_branch
      %16 = sbr.rel (0) target = $region13
    $region12: #{tpu_custom_call.1} parent=1 // pred_region
      _
    $region13: #{tpu_custom_call.1} parent=1 // pred_fallthru
      _
    // Predicated region
    $region14: #{tpu_custom_call.1} parent=1 // pred_check
      _
    $region15: #{tpu_custom_call.1} parent=1 // pred_check_branch
      %18 = sbr.rel (0) target = $region17
    $region16: #{tpu_custom_call.1} parent=1 // pred_region
      _
    $region17: #{tpu_custom_call.1} parent=1 // pred_fallthru
      _
    // Predicated region
    $region18: #{tpu_custom_call.1} parent=1 // pred_check
      _
    $region19: #{tpu_custom_call.1} parent=1 // pred_check_branch
      %20 = sbr.rel (0) target = $region21
    $region20: #{tpu_custom_call.1} parent=1 // pred_region
      _
    $region21: #{tpu_custom_call.1} parent=1 // pred_fallthru
      _
    %v21 = vld [vmem:[%s0] sm:$0x1]
    %v22 = vld [vmem:[%s1] sm:$0x1]
    %v23 = vld [vmem:[%s2] sm:$0x1]
    %v24 = vlaneseq
    %v25 = vshrl.u32 %v24, 7
    %v26 = vadd.s32 %v25, 8
    %v27 = vlaneseq
    %v28 = vshrl.u32 %v27, 7
    %v29 = vsub.s32 0, %v28
    %v30 = vrot.slane %v21, %v29
    %vm31 = vcmp.eq.s32.totalorder %v25, %v30
    %vm32 = vcmp.eq.s32.totalorder %v26, %v30
    %v33 = vsel %vm31, 1, 0
    %v34 = vsel %vm32, 1, 0
    %v35 = vcvt.s32.f32 %v33
    %v36 = vcvt.s32.f32 %v34
    %v37 = vlaneseq
    %v38 = vshrl.u32 %v37, 7
    %v39 = vsub.s32 0, %v38
    %v40 = vrot.slane %v22, %v39
    %vm41 = vcmp.eq.s32.totalorder %v25, %v40
    %vm42 = vcmp.eq.s32.totalorder %v26, %v40
    %v43 = vsel %vm41, 1, 0
    %v44 = vsel %vm42, 1, 0
    %v45 = vcvt.s32.f32 %v43
    %v46 = vcvt.s32.f32 %v44
    %v47 = vsub.f32 %v35, %v45
    %v48 = vsub.f32 %v36, %v46
    %v49 = vlaneseq
    %v50 = vshrl.u32 %v49, 7
    %v51 = vsub.s32 0, %v50
    %v52 = vrot.slane %v23, %v51
    %vm53 = vcmp.eq.s32.totalorder %v25, %v52
    %v54 = vsel %vm53, 1, 0
    %v55 = vcvt.s32.f32 %v54
    %v56 = vld [vmem:[%s3] sm:$0xff]
    %v57 = vld [vmem:[%s3 + $0x8] sm:$0xff]
    %v58 = vld [vmem:[%s3 + $0x10] sm:$0xff]
    %v59 = vld [vmem:[%s3 + $0x18] sm:$0xff]
    %v60 = vld [vmem:[%s4] sm:$0xff]
    %v61 = vld [vmem:[%s4 + $0x8] sm:$0xff]
    %v62 = vld [vmem:[%s4 + $0x10] sm:$0xff]
    %v63 = vld [vmem:[%s4 + $0x18] sm:$0xff]
    %vm64 = vcmask 31744
    %v66 = vsel %vm64, %v60, 0
    %v69 = vsel %vm64, %v61, 0
    %v72 = vsel %vm64, %v62, 0
    %v75 = vsel %vm64, %v63, 0
    %vm77 = vcmask 1043456
    %v79 = vsel %vm77, %v55, 0
    %81 = vmatprep.subr.mxu0 0.0
    %82 = vmatpush1.msra.mxu0 0.0
    %83 = vmatprep.subr.mxu0 0.0
    %84 = vmatpush1.msra.mxu0 0.0
    %85 = vmatprep.subr.mxu0 0.0
    %86 = vmatpush1.msra.mxu0 0.0
    %87 = vmatprep.subr.mxu0 0.0
    %88 = vmatpush1.msra.mxu0 0.0
    %89 = vmatprep.subr.mxu0 0.0
    %90 = vmatpush1.msra.mxu0 0.0
    %91 = vmatprep.subr.mxu0 0.0
    %92 = vmatpush1.msra.mxu0 0.0
    %93 = vmatprep.subr.mxu0 0.0
    %94 = vmatpush1.msra.mxu0 0.0
    %95 = vmatprep.subr.mxu0 0.0
    %96 = vmatpush1.msra.mxu0 0.0
    %97 = vmatprep.subr.mxu0 0.0
    %98 = vmatpush1.msra.mxu0 0.0
    %99 = vmatprep.subr.mxu0 0.0
    %100 = vmatpush1.msra.mxu0 0.0
    %101 = vmatprep.subr.mxu0 0.0
    %102 = vmatpush1.msra.mxu0 0.0
    %103 = vmatprep.subr.mxu0 0.0
    %104 = vmatpush1.msra.mxu0 0.0
    %105 = vmatprep.subr.mxu0 0.0
    %106 = vmatpush1.msra.mxu0 0.0
    %107 = vmatprep.subr.mxu0 0.0
    %108 = vmatpush1.msra.mxu0 0.0
    %109 = vmatprep.subr.mxu0 0.0
    %110 = vmatpush1.msra.mxu0 0.0
    %111 = vmatprep.subr.mxu0 0.0
    %112 = vmatpush1.msra.mxu0 %v79
    %113 = vmatprep.subr.mxu0 0.0
    %114 = vmatpush2.msra.mxu0 0.0
    %115 = vmatprep.subr.mxu0 0.0
    %116 = vmatpush2.msra.mxu0 0.0
    %117 = vmatprep.subr.mxu0 0.0
    %118 = vmatpush2.msra.mxu0 0.0
    %119 = vmatprep.subr.mxu0 0.0
    %120 = vmatpush2.msra.mxu0 0.0
    %121 = vmatprep.subr.mxu0 0.0
    %122 = vmatpush2.msra.mxu0 0.0
    %123 = vmatprep.subr.mxu0 0.0
    %124 = vmatpush2.msra.mxu0 0.0
    %125 = vmatprep.subr.mxu0 0.0
    %126 = vmatpush2.msra.mxu0 0.0
    %127 = vmatprep.subr.mxu0 0.0
    %128 = vmatpush2.msra.mxu0 0.0
    %129 = vmatprep.subr.mxu0 0.0
    %130 = vmatpush2.msra.mxu0 0.0
    %131 = vmatprep.subr.mxu0 0.0
    %132 = vmatpush2.msra.mxu0 0.0
    %133 = vmatprep.subr.mxu0 0.0
    %134 = vmatpush2.msra.mxu0 0.0
    %135 = vmatprep.subr.mxu0 0.0
    %136 = vmatpush2.msra.mxu0 0.0
    %137 = vmatprep.subr.mxu0 0.0
    %138 = vmatpush2.msra.mxu0 0.0
    %139 = vmatprep.subr.mxu0 0.0
    %140 = vmatpush2.msra.mxu0 0.0
    %141 = vmatprep.subr.mxu0 0.0
    %142 = vmatpush2.msra.mxu0 0.0
    %143 = vmatprep.subr.mxu0 0.0
    %144 = vmatpush2.msra.mxu0 0.0
    %145 = vmatprep.mubr.f32.mxu0 0.0
    %146 = vmatmul.mubr.f32.gmra.mxu0 %v66
    %v147 = vpop.f32.mrf.mxu0
    %v148 = vadd.f32 0.0, %v147
    %v149 = vpop.f32.mrf.mxu0
    %150 = vmatprep.mubr.f32.mxu0 0.0
    %151 = vmatmul.mubr.f32.gmra.mxu0 %v69
    %v152 = vpop.f32.mrf.mxu0
    %v153 = vadd.f32 0.0, %v152
    %v154 = vpop.f32.mrf.mxu0
    %155 = vmatprep.mubr.f32.mxu0 0.0
    %156 = vmatmul.mubr.f32.gmra.mxu0 %v72
    %v157 = vpop.f32.mrf.mxu0
    %v158 = vadd.f32 0.0, %v157
    %v159 = vpop.f32.mrf.mxu0
    %160 = vmatprep.mubr.f32.mxu0 0.0
    %161 = vmatmul.mubr.f32.gmra.mxu0 %v75
    %v162 = vpop.f32.mrf.mxu0
    %v163 = vadd.f32 0.0, %v162
    %v164 = vpop.f32.mrf.mxu0
    %165 = vdwg.mxu0
    %vm166 = vcmask 130048
    %v168 = vsel %vm166, %v56, 0
    %v171 = vsel %vm166, %v57, 0
    %v174 = vsel %vm166, %v58, 0
    %v177 = vsel %vm166, %v59, 0
    %179 = vmatprep.subr.mxu0 0.0
    %180 = vmatpush1.msra.mxu0 0.0
    %181 = vmatprep.subr.mxu0 0.0
    %182 = vmatpush1.msra.mxu0 0.0
    %183 = vmatprep.subr.mxu0 0.0
    %184 = vmatpush1.msra.mxu0 0.0
    %185 = vmatprep.subr.mxu0 0.0
    %186 = vmatpush1.msra.mxu0 0.0
    %187 = vmatprep.subr.mxu0 0.0
    %188 = vmatpush1.msra.mxu0 0.0
    %189 = vmatprep.subr.mxu0 0.0
    %190 = vmatpush1.msra.mxu0 0.0
    %191 = vmatprep.subr.mxu0 0.0
    %192 = vmatpush1.msra.mxu0 0.0
    %193 = vmatprep.subr.mxu0 0.0
    %194 = vmatpush1.msra.mxu0 0.0
    %195 = vmatprep.subr.mxu0 0.0
    %196 = vmatpush1.msra.mxu0 0.0
    %197 = vmatprep.subr.mxu0 0.0
    %198 = vmatpush1.msra.mxu0 0.0
    %199 = vmatprep.subr.mxu0 0.0
    %200 = vmatpush1.msra.mxu0 0.0
    %201 = vmatprep.subr.mxu0 0.0
    %202 = vmatpush1.msra.mxu0 0.0
    %203 = vmatprep.subr.mxu0 0.0
    %204 = vmatpush1.msra.mxu0 0.0
    %205 = vmatprep.subr.mxu0 0.0
    %206 = vmatpush1.msra.mxu0 0.0
    %207 = vmatprep.subr.mxu0 0.0
    %208 = vmatpush1.msra.mxu0 %v48
    %209 = vmatprep.subr.mxu0 0.0
    %210 = vmatpush1.msra.mxu0 %v47
    %211 = vmatprep.subr.mxu0 0.0
    %212 = vmatpush2.msra.mxu0 0.0
    %213 = vmatprep.subr.mxu0 0.0
    %214 = vmatpush2.msra.mxu0 0.0
    %215 = vmatprep.subr.mxu0 0.0
    %216 = vmatpush2.msra.mxu0 0.0
    %217 = vmatprep.subr.mxu0 0.0
    %218 = vmatpush2.msra.mxu0 0.0
    %219 = vmatprep.subr.mxu0 0.0
    %220 = vmatpush2.msra.mxu0 0.0
    %221 = vmatprep.subr.mxu0 0.0
    %222 = vmatpush2.msra.mxu0 0.0
    %223 = vmatprep.subr.mxu0 0.0
    %224 = vmatpush2.msra.mxu0 0.0
    %225 = vmatprep.subr.mxu0 0.0
    %226 = vmatpush2.msra.mxu0 0.0
    %227 = vmatprep.subr.mxu0 0.0
    %228 = vmatpush2.msra.mxu0 0.0
    %229 = vmatprep.subr.mxu0 0.0
    %230 = vmatpush2.msra.mxu0 0.0
    %231 = vmatprep.subr.mxu0 0.0
    %232 = vmatpush2.msra.mxu0 0.0
    %233 = vmatprep.subr.mxu0 0.0
    %234 = vmatpush2.msra.mxu0 0.0
    %235 = vmatprep.subr.mxu0 0.0
    %236 = vmatpush2.msra.mxu0 0.0
    %237 = vmatprep.subr.mxu0 0.0
    %238 = vmatpush2.msra.mxu0 0.0
    %239 = vmatprep.subr.mxu0 0.0
    %240 = vmatpush2.msra.mxu0 0.0
    %241 = vmatprep.subr.mxu0 0.0
    %242 = vmatpush2.msra.mxu0 0.0
    %243 = vmatprep.mubr.f32.mxu0 0.0
    %244 = vmatmul.mubr.f32.gmra.mxu0 %v168
    %v245 = vpop.f32.mrf.mxu0
    %v246 = vadd.f32 %v148, %v245
    %v247 = vpop.f32.mrf.mxu0
    %248 = vmatprep.mubr.f32.mxu0 0.0
    %249 = vmatmul.mubr.f32.gmra.mxu0 %v171
    %v250 = vpop.f32.mrf.mxu0
    %v251 = vadd.f32 %v153, %v250
    %v252 = vpop.f32.mrf.mxu0
    %253 = vmatprep.mubr.f32.mxu0 0.0
    %254 = vmatmul.mubr.f32.gmra.mxu0 %v174
    %v255 = vpop.f32.mrf.mxu0
    %v256 = vadd.f32 %v158, %v255
    %v257 = vpop.f32.mrf.mxu0
    %258 = vmatprep.mubr.f32.mxu0 0.0
    %259 = vmatmul.mubr.f32.gmra.mxu0 %v177
    %v260 = vpop.f32.mrf.mxu0
    %v261 = vadd.f32 %v163, %v260
    %v262 = vpop.f32.mrf.mxu0
    %263 = vdwg.mxu0
    %v264 = vand.u32 2147483647, %v246
    %v265 = vand.u32 2147483647, %v251
    %v266 = vand.u32 2147483647, %v256
    %v267 = vand.u32 2147483647, %v261
    %v268 = vadd.f32 %v264, %v265
    %v269 = vadd.f32 %v268, %v266
    %v270 = vadd.f32 %v269, %v267
    %v271 = vrot.slane %v270, 4
    %v272 = vadd.f32 %v270, %v271
    %v273 = vrot.slane %v272, 2
    %v274 = vadd.f32 %v272, %v273
    %v275 = vrot.slane %v274, 1
    %v276 = vadd.f32 %v274, %v275
    %277 = vst [vmem:[#allocation2] sm:$0x1] %v276
    // Predicated region
    $region22: #{tpu_custom_call.1} parent=1 // pred_check
      _
    $region23: #{tpu_custom_call.1} parent=1 // pred_check_branch
      %279 = sbr.rel (0) target = $region25
    $region24: #{tpu_custom_call.1} parent=1 // pred_region
      %s281 = ssub.s32 16, 16
      %282 = vsyncadd [#allocation3], %s281
      %s284 = sshll.u32 [#allocation2], 4
      %s285 = int_to_ptr.vmem [resolvable:$true] %s284
      %287 = dma.vmem_to_hbm [thread:$0]  %s285, 16, %s5, [#allocation3]
    $region25: #{tpu_custom_call.1} parent=1 // pred_fallthru
      _
    // Predicated region
    $region26: #{tpu_custom_call.1} parent=1 // pred_check
      _
    $region27: #{tpu_custom_call.1} parent=1 // pred_check_branch
      %289 = sbr.rel (0) target = $region29
    $region28: #{tpu_custom_call.1} parent=1 // pred_region
      %290 = dma.done [#allocation3], 16
    $region29: #{tpu_custom_call.1} parent=1 // pred_fallthru
      _
    %291 = vsyncpa [#allocation3], 1

</llo_original>
